<compile_context>
chip_gen: v5e
topology: v5e:2x2
jax: 0.10.0
libtpu: 0.0.40
codegen_flags: <defaults>
</compile_context>

<pallas_src>
import functools

import jax
import jax.numpy as jnp
import numpy as np
from jax.experimental import pallas as pl
from jax.experimental.pallas import tpu as pltpu

EPS = 1e-5


def _bn_train(x, gamma=None, beta=None):
    """BatchNorm1d, training mode. Single pass: var = E[x^2] - E[x]^2."""
    inv_n = 1.0 / x.shape[0]
    s1 = jnp.sum(x, axis=0, keepdims=True)
    s2 = jnp.sum(x * x, axis=0, keepdims=True)
    mean = s1 * inv_n
    var = s2 * inv_n - mean * mean
    xh = (x - mean) * jax.lax.rsqrt(var + EPS)
    if gamma is not None:
        xh = xh * gamma + beta
    return xh


def simsiam_kernel(
    x_ref,      # (B, C*H*W)        image, NCHW flattened to 2D
    wenc_ref,   # (C*H*W, D_in)     GAP folded into the encoder linear
    w1_ref,     # (D_in, Hp)        projection Linear 1 (no bias)
    w2_ref,     # (Hp, Hp)          projection Linear 2 (no bias)
    w3_ref,     # (Hp, D_out)       projection Linear 3 (no bias)
    w4_ref,     # (D_in, Hq_pad)    prediction Linear 1 (no bias, lane-padded)
    w5_ref,     # (Hq_pad, D_out)   prediction Linear 2 (bias packed in vecs)
    vecs_ref,   # (8, md)           rows: g1,b1,g2,b2,g4,b4,b5,pad
    z_ref,      # (B, D_out)
    p_ref,      # (B, D_out)
    *, hp, hq, dout,
):
    # ---- synthetic encoder (GAP pre-folded into the weight) ----
    f = jnp.dot(x_ref[...], wenc_ref[...], preferred_element_type=jnp.float32)

    # ---- unpack the small per-feature vectors ----
    g1 = vecs_ref[0:1, :hp]
    b1 = vecs_ref[1:2, :hp]
    g2 = vecs_ref[2:3, :hp]
    b2 = vecs_ref[3:4, :hp]
    g4 = vecs_ref[4:5, :hq]
    b4 = vecs_ref[5:6, :hq]
    b5 = vecs_ref[6:7, :dout]

    # ---- projection head ----
    h = jnp.dot(f, w1_ref[...], preferred_element_type=jnp.float32)
    h = jnp.maximum(_bn_train(h, g1, b1), 0.0)
    h = jnp.dot(h, w2_ref[...], preferred_element_type=jnp.float32)
    h = jnp.maximum(_bn_train(h, g2, b2), 0.0)
    h = jnp.dot(h, w3_ref[...], preferred_element_type=jnp.float32)
    z_ref[...] = _bn_train(h)                       # BN, affine=False; detach is a no-op

    # ---- prediction head (applied to f, exactly as in the spec's forward) ----
    q = jnp.dot(f, w4_ref[...], preferred_element_type=jnp.float32)
    q = jnp.maximum(_bn_train(q, g4, b4), 0.0)
    p_ref[...] = jnp.dot(q, w5_ref[...], preferred_element_type=jnp.float32) + b5


def _round_up(n, m):
    return ((n + m - 1) // m) * m


def _pack_row(v, width, fill):
    """Place 1-D vector v into a length-`width` row, padded with `fill`."""
    v = v.reshape(-1).astype(jnp.float32)
    row = jnp.full((width,), fill, jnp.float32)
    return row.at[: v.shape[0]].set(v)


def simsiam_forward(x, params):
    """x: (B, C, H, W) float32. Returns (z, p), each (B, output_dim)."""
    B, C, H, W = x.shape
    hw = H * W
    x2d = x.reshape(B, C * hw)

    din = params["wenc"].shape[1]
    hp = params["w1"].shape[1]
    hq = params["w4"].shape[1]
    dout = params["w3"].shape[1]

    # Fold GAP into the encoder matmul: row (c*HW + s) of the big weight is
    # wenc[c, :] / HW, so x2d @ w_enc_big == mean_spatial(x) @ wenc exactly.
    w_enc_big = jnp.repeat(params["wenc"], hw, axis=0) * (1.0 / hw)

    # Pad prediction hidden dim to a full 128-lane tile. Exact: padded hidden
    # units stay 0 through BN (gamma*0 + 0) and ReLU, and their w5 rows are 0.
    hq_pad = _round_up(hq, 128)
    w4p = jnp.pad(params["w4"], ((0, 0), (0, hq_pad - hq)))
    w5p = jnp.pad(params["w5"], ((0, hq_pad - hq), (0, 0)))

    # Pack the 7 tiny vectors into a single (8, md) operand (one DMA).
    md = _round_up(max(hp, hq_pad, dout), 128)
    vecs = jnp.stack(
        [
            _pack_row(params["g1"], md, 1.0),
            _pack_row(params["b1"], md, 0.0),
            _pack_row(params["g2"], md, 1.0),
            _pack_row(params["b2"], md, 0.0),
            _pack_row(params["g4"], md, 1.0),   # pad lanes get gamma=1
            _pack_row(params["b4"], md, 0.0),   # pad lanes get beta=0
            _pack_row(params["b5"], md, 0.0),
            jnp.zeros((md,), jnp.float32),
        ],
        axis=0,
    )

    operands = (x2d, w_enc_big, params["w1"], params["w2"], params["w3"],
                w4p, w5p, vecs)

    flops = 2 * B * (C * hw * din + din * hp + hp * hp + hp * dout
                     + din * hq_pad + hq_pad * dout)
    transcendentals = 2 * hp + dout + hq_pad          # one rsqrt per BN feature
    bytes_accessed = (sum(int(np.prod(a.shape)) * 4 for a in operands)
                      + 2 * B * dout * 4)

    kernel = functools.partial(simsiam_kernel, hp=hp, hq=hq_pad, dout=dout)
    vmem = pltpu.MemorySpace.VMEM
    out_shape = (jax.ShapeDtypeStruct((B, dout), jnp.float32),
                 jax.ShapeDtypeStruct((B, dout), jnp.float32))

    # No grid: every operand fits comfortably in VMEM at these shapes, so the
    # BatchNorm cross-batch reductions see the whole batch in one block.
    return pl.pallas_call(
        kernel,
        out_shape=out_shape,
        in_specs=[pl.BlockSpec(memory_space=vmem) for _ in operands],
        out_specs=(pl.BlockSpec(memory_space=vmem),
                   pl.BlockSpec(memory_space=vmem)),
        cost_estimate=pl.CostEstimate(
            flops=int(flops),
            transcendentals=int(transcendentals),
            bytes_accessed=int(bytes_accessed),
        ),
    )(*operands)


# ----------------------------------------------------------------------------
# Pure-JAX reference (original, un-fused formulation) for validation.
# ----------------------------------------------------------------------------
def _bn_ref(x, gamma=None, beta=None):
    mean = jnp.mean(x, axis=0, keepdims=True)
    var = jnp.mean((x - mean) ** 2, axis=0, keepdims=True)
    xh = (x - mean) * jax.lax.rsqrt(var + EPS)
    if gamma is not None:
        xh = xh * gamma + beta
    return xh


def simsiam_reference(x, params):
    B, C, H, W = x.shape
    gap = jnp.mean(x.reshape(B, C, H * W), axis=2)
    f = gap @ params["wenc"]
    h = jnp.maximum(_bn_ref(f @ params["w1"], params["g1"], params["b1"]), 0.0)
    h = jnp.maximum(_bn_ref(h @ params["w2"], params["g2"], params["b2"]), 0.0)
    z = _bn_ref(h @ params["w3"])
    q = jnp.maximum(_bn_ref(f @ params["w4"], params["g4"], params["b4"]), 0.0)
    p = q @ params["w5"] + params["b5"]
    return z, p


def make_params(key, C, input_dim, proj_hidden_dim, pred_hidden_dim, output_dim):
    ks = jax.random.split(key, 8)
    scale = 0.05

    def lin(k, din_, dout_):
        return scale * jax.random.normal(k, (din_, dout_), jnp.float32)

    return {
        "wenc": lin(ks[0], C, input_dim),
        # projection head
        "w1": lin(ks[1], input_dim, proj_hidden_dim),
        "g1": jnp.ones((1, proj_hidden_dim), jnp.float32),
        "b1": jnp.zeros((1, proj_hidden_dim), jnp.float32),
        "w2": lin(ks[2], proj_hidden_dim, proj_hidden_dim),
        "g2": jnp.ones((1, proj_hidden_dim), jnp.float32),
        "b2": jnp.zeros((1, proj_hidden_dim), jnp.float32),
        "w3": lin(ks[3], proj_hidden_dim, output_dim),
        # prediction head
        "w4": lin(ks[4], output_dim, pred_hidden_dim),
        "g4": jnp.ones((1, pred_hidden_dim), jnp.float32),
        "b4": jnp.zeros((1, pred_hidden_dim), jnp.float32),
        "w5": lin(ks[5], pred_hidden_dim, output_dim),
        "b5": 0.01 * jax.random.normal(ks[6], (1, output_dim), jnp.float32),
    }


if __name__ == "__main__":
    # Small shapes consistent with the forward (NCHW image -> encoder -> heads).
    B, C, H, W = 8, 4, 8, 8
    input_dim, proj_hidden_dim, pred_hidden_dim, output_dim = 128, 128, 64, 128

    key = jax.random.PRNGKey(0)
    kx, kp = jax.random.split(key)
    x = jax.random.normal(kx, (B, C, H, W), jnp.float32)
    params = make_params(kp, C, input_dim, proj_hidden_dim, pred_hidden_dim,
                         output_dim)

    fwd = jax.jit(simsiam_forward)
    z, p = fwd(x, params)
    jax.block_until_ready((z, p))

    z_ref, p_ref = simsiam_reference(x, params)
    np.testing.assert_allclose(np.asarray(z), np.asarray(z_ref),
                               rtol=5e-3, atol=5e-3)
    np.testing.assert_allclose(np.asarray(p), np.asarray(p_ref),
                               rtol=5e-3, atol=5e-3)
    assert z.shape == (B, output_dim) and p.shape == (B, output_dim)

    print("KERNEL_OK")
</pallas_src>

<mosaic_0001>
module attributes {stable_mosaic.version = 11 : i64} {
  func.func @simsiam_kernel(%arg0: memref<8x256xf32, #tpu.memory_space<vmem>>, %arg1: memref<256x128xf32, #tpu.memory_space<vmem>>, %arg2: memref<128x128xf32, #tpu.memory_space<vmem>>, %arg3: memref<128x128xf32, #tpu.memory_space<vmem>>, %arg4: memref<128x128xf32, #tpu.memory_space<vmem>>, %arg5: memref<128x128xf32, #tpu.memory_space<vmem>>, %arg6: memref<128x128xf32, #tpu.memory_space<vmem>>, %arg7: memref<8x128xf32, #tpu.memory_space<vmem>>, %arg8: memref<8x128xf32, #tpu.memory_space<vmem>>, %arg9: memref<8x128xf32, #tpu.memory_space<vmem>>) attributes {dimension_semantics = [], scalar_prefetch = 0 : i64, scratch_operands = 0 : i64, tpu.core_type = #tpu.core_type<tc>} {
    %c0 = arith.constant 0 : index
    %c0_0 = arith.constant 0 : index
    %0 = vector.load %arg0[%c0, %c0_0] : memref<8x256xf32, #tpu.memory_space<vmem>>, vector<8x256xf32>
    %c0_1 = arith.constant 0 : index
    %c0_2 = arith.constant 0 : index
    %1 = vector.load %arg1[%c0_1, %c0_2] : memref<256x128xf32, #tpu.memory_space<vmem>>, vector<256x128xf32>
    %cst = arith.constant dense<0.000000e+00> : vector<8x128xf32>
    %2 = tpu.matmul %0, %1, %cst {dimension_numbers = #tpu.dot_dimension_numbers<[1], [0], [0], [1], [0, 0, 1, 1], [], []>} : vector<8x256xf32>, vector<256x128xf32>, vector<8x128xf32> -> vector<8x128xf32>
    %c0_3 = arith.constant 0 : index
    %c0_4 = arith.constant 0 : index
    %3 = vector.load %arg7[%c0_3, %c0_4] : memref<8x128xf32, #tpu.memory_space<vmem>>, vector<1x128xf32>
    %c1 = arith.constant 1 : index
    %c0_5 = arith.constant 0 : index
    %4 = vector.load %arg7[%c1, %c0_5] : memref<8x128xf32, #tpu.memory_space<vmem>>, vector<1x128xf32>
    %c2 = arith.constant 2 : index
    %c0_6 = arith.constant 0 : index
    %5 = vector.load %arg7[%c2, %c0_6] : memref<8x128xf32, #tpu.memory_space<vmem>>, vector<1x128xf32>
    %c3 = arith.constant 3 : index
    %c0_7 = arith.constant 0 : index
    %6 = vector.load %arg7[%c3, %c0_7] : memref<8x128xf32, #tpu.memory_space<vmem>>, vector<1x128xf32>
    %c4 = arith.constant 4 : index
    %c0_8 = arith.constant 0 : index
    %7 = vector.load %arg7[%c4, %c0_8] : memref<8x128xf32, #tpu.memory_space<vmem>>, vector<1x128xf32>
    %c5 = arith.constant 5 : index
    %c0_9 = arith.constant 0 : index
    %8 = vector.load %arg7[%c5, %c0_9] : memref<8x128xf32, #tpu.memory_space<vmem>>, vector<1x128xf32>
    %c6 = arith.constant 6 : index
    %c0_10 = arith.constant 0 : index
    %9 = vector.load %arg7[%c6, %c0_10] : memref<8x128xf32, #tpu.memory_space<vmem>>, vector<1x128xf32>
    %c0_11 = arith.constant 0 : index
    %c0_12 = arith.constant 0 : index
    %10 = vector.load %arg2[%c0_11, %c0_12] : memref<128x128xf32, #tpu.memory_space<vmem>>, vector<128x128xf32>
    %cst_13 = arith.constant dense<0.000000e+00> : vector<8x128xf32>
    %11 = tpu.matmul %2, %10, %cst_13 {dimension_numbers = #tpu.dot_dimension_numbers<[1], [0], [0], [1], [0, 0, 1, 1], [], []>} : vector<8x128xf32>, vector<128x128xf32>, vector<8x128xf32> -> vector<8x128xf32>
    %cst_14 = arith.constant dense<0.000000e+00> : vector<128xf32>
    %12 = vector.multi_reduction <add>, %11, %cst_14 [0] : vector<8x128xf32> to vector<128xf32>
    %13 = vector.shape_cast %12 : vector<128xf32> to vector<1x128xf32>
    %14 = arith.mulf %11, %11 : vector<8x128xf32>
    %cst_15 = arith.constant dense<0.000000e+00> : vector<128xf32>
    %15 = vector.multi_reduction <add>, %14, %cst_15 [0] : vector<8x128xf32> to vector<128xf32>
    %16 = vector.shape_cast %15 : vector<128xf32> to vector<1x128xf32>
    %cst_16 = arith.constant 1.250000e-01 : f32
    %17 = vector.broadcast %cst_16 : f32 to vector<1x128xf32>
    %18 = arith.mulf %13, %17 : vector<1x128xf32>
    %cst_17 = arith.constant 1.250000e-01 : f32
    %19 = vector.broadcast %cst_17 : f32 to vector<1x128xf32>
    %20 = arith.mulf %16, %19 : vector<1x128xf32>
    %21 = arith.mulf %18, %18 : vector<1x128xf32>
    %22 = arith.subf %20, %21 : vector<1x128xf32>
    %23 = vector.broadcast %18 : vector<1x128xf32> to vector<8x128xf32>
    %24 = arith.subf %11, %23 : vector<8x128xf32>
    %cst_18 = arith.constant 9.99999974E-6 : f32
    %25 = vector.broadcast %cst_18 : f32 to vector<1x128xf32>
    %26 = arith.addf %22, %25 : vector<1x128xf32>
    %27 = math.rsqrt %26 : vector<1x128xf32>
    %28 = vector.broadcast %27 : vector<1x128xf32> to vector<8x128xf32>
    %29 = arith.mulf %24, %28 : vector<8x128xf32>
    %30 = vector.broadcast %3 : vector<1x128xf32> to vector<8x128xf32>
    %31 = arith.mulf %29, %30 : vector<8x128xf32>
    %32 = vector.broadcast %4 : vector<1x128xf32> to vector<8x128xf32>
    %33 = arith.addf %31, %32 : vector<8x128xf32>
    %cst_19 = arith.constant 0.000000e+00 : f32
    %34 = vector.broadcast %cst_19 : f32 to vector<8x128xf32>
    %35 = arith.maximumf %33, %34 : vector<8x128xf32>
    %c0_20 = arith.constant 0 : index
    %c0_21 = arith.constant 0 : index
    %36 = vector.load %arg3[%c0_20, %c0_21] : memref<128x128xf32, #tpu.memory_space<vmem>>, vector<128x128xf32>
    %cst_22 = arith.constant dense<0.000000e+00> : vector<8x128xf32>
    %37 = tpu.matmul %35, %36, %cst_22 {dimension_numbers = #tpu.dot_dimension_numbers<[1], [0], [0], [1], [0, 0, 1, 1], [], []>} : vector<8x128xf32>, vector<128x128xf32>, vector<8x128xf32> -> vector<8x128xf32>
    %cst_23 = arith.constant dense<0.000000e+00> : vector<128xf32>
    %38 = vector.multi_reduction <add>, %37, %cst_23 [0] : vector<8x128xf32> to vector<128xf32>
    %39 = vector.shape_cast %38 : vector<128xf32> to vector<1x128xf32>
    %40 = arith.mulf %37, %37 : vector<8x128xf32>
    %cst_24 = arith.constant dense<0.000000e+00> : vector<128xf32>
    %41 = vector.multi_reduction <add>, %40, %cst_24 [0] : vector<8x128xf32> to vector<128xf32>
    %42 = vector.shape_cast %41 : vector<128xf32> to vector<1x128xf32>
    %cst_25 = arith.constant 1.250000e-01 : f32
    %43 = vector.broadcast %cst_25 : f32 to vector<1x128xf32>
    %44 = arith.mulf %39, %43 : vector<1x128xf32>
    %cst_26 = arith.constant 1.250000e-01 : f32
    %45 = vector.broadcast %cst_26 : f32 to vector<1x128xf32>
    %46 = arith.mulf %42, %45 : vector<1x128xf32>
    %47 = arith.mulf %44, %44 : vector<1x128xf32>
    %48 = arith.subf %46, %47 : vector<1x128xf32>
    %49 = vector.broadcast %44 : vector<1x128xf32> to vector<8x128xf32>
    %50 = arith.subf %37, %49 : vector<8x128xf32>
    %cst_27 = arith.constant 9.99999974E-6 : f32
    %51 = vector.broadcast %cst_27 : f32 to vector<1x128xf32>
    %52 = arith.addf %48, %51 : vector<1x128xf32>
    %53 = math.rsqrt %52 : vector<1x128xf32>
    %54 = vector.broadcast %53 : vector<1x128xf32> to vector<8x128xf32>
    %55 = arith.mulf %50, %54 : vector<8x128xf32>
    %56 = vector.broadcast %5 : vector<1x128xf32> to vector<8x128xf32>
    %57 = arith.mulf %55, %56 : vector<8x128xf32>
    %58 = vector.broadcast %6 : vector<1x128xf32> to vector<8x128xf32>
    %59 = arith.addf %57, %58 : vector<8x128xf32>
    %cst_28 = arith.constant 0.000000e+00 : f32
    %60 = vector.broadcast %cst_28 : f32 to vector<8x128xf32>
    %61 = arith.maximumf %59, %60 : vector<8x128xf32>
    %c0_29 = arith.constant 0 : index
    %c0_30 = arith.constant 0 : index
    %62 = vector.load %arg4[%c0_29, %c0_30] : memref<128x128xf32, #tpu.memory_space<vmem>>, vector<128x128xf32>
    %cst_31 = arith.constant dense<0.000000e+00> : vector<8x128xf32>
    %63 = tpu.matmul %61, %62, %cst_31 {dimension_numbers = #tpu.dot_dimension_numbers<[1], [0], [0], [1], [0, 0, 1, 1], [], []>} : vector<8x128xf32>, vector<128x128xf32>, vector<8x128xf32> -> vector<8x128xf32>
    %cst_32 = arith.constant dense<0.000000e+00> : vector<128xf32>
    %64 = vector.multi_reduction <add>, %63, %cst_32 [0] : vector<8x128xf32> to vector<128xf32>
    %65 = vector.shape_cast %64 : vector<128xf32> to vector<1x128xf32>
    %66 = arith.mulf %63, %63 : vector<8x128xf32>
    %cst_33 = arith.constant dense<0.000000e+00> : vector<128xf32>
    %67 = vector.multi_reduction <add>, %66, %cst_33 [0] : vector<8x128xf32> to vector<128xf32>
    %68 = vector.shape_cast %67 : vector<128xf32> to vector<1x128xf32>
    %cst_34 = arith.constant 1.250000e-01 : f32
    %69 = vector.broadcast %cst_34 : f32 to vector<1x128xf32>
    %70 = arith.mulf %65, %69 : vector<1x128xf32>
    %cst_35 = arith.constant 1.250000e-01 : f32
    %71 = vector.broadcast %cst_35 : f32 to vector<1x128xf32>
    %72 = arith.mulf %68, %71 : vector<1x128xf32>
    %73 = arith.mulf %70, %70 : vector<1x128xf32>
    %74 = arith.subf %72, %73 : vector<1x128xf32>
    %75 = vector.broadcast %70 : vector<1x128xf32> to vector<8x128xf32>
    %76 = arith.subf %63, %75 : vector<8x128xf32>
    %cst_36 = arith.constant 9.99999974E-6 : f32
    %77 = vector.broadcast %cst_36 : f32 to vector<1x128xf32>
    %78 = arith.addf %74, %77 : vector<1x128xf32>
    %79 = math.rsqrt %78 : vector<1x128xf32>
    %80 = vector.broadcast %79 : vector<1x128xf32> to vector<8x128xf32>
    %81 = arith.mulf %76, %80 : vector<8x128xf32>
    %c0_37 = arith.constant 0 : index
    %c0_38 = arith.constant 0 : index
    %82 = vector.load %arg8[%c0_37, %c0_38] : memref<8x128xf32, #tpu.memory_space<vmem>>, vector<8x128xf32>
    tpu.vector_store %arg8[%c0_37, %c0_38], %81 {strides = array<i32>} : memref<8x128xf32, #tpu.memory_space<vmem>>, vector<8x128xf32>,
    %c0_39 = arith.constant 0 : index
    %c0_40 = arith.constant 0 : index
    %83 = vector.load %arg5[%c0_39, %c0_40] : memref<128x128xf32, #tpu.memory_space<vmem>>, vector<128x128xf32>
    %cst_41 = arith.constant dense<0.000000e+00> : vector<8x128xf32>
    %84 = tpu.matmul %2, %83, %cst_41 {dimension_numbers = #tpu.dot_dimension_numbers<[1], [0], [0], [1], [0, 0, 1, 1], [], []>} : vector<8x128xf32>, vector<128x128xf32>, vector<8x128xf32> -> vector<8x128xf32>
    %cst_42 = arith.constant dense<0.000000e+00> : vector<128xf32>
    %85 = vector.multi_reduction <add>, %84, %cst_42 [0] : vector<8x128xf32> to vector<128xf32>
    %86 = vector.shape_cast %85 : vector<128xf32> to vector<1x128xf32>
    %87 = arith.mulf %84, %84 : vector<8x128xf32>
    %cst_43 = arith.constant dense<0.000000e+00> : vector<128xf32>
    %88 = vector.multi_reduction <add>, %87, %cst_43 [0] : vector<8x128xf32> to vector<128xf32>
    %89 = vector.shape_cast %88 : vector<128xf32> to vector<1x128xf32>
    %cst_44 = arith.constant 1.250000e-01 : f32
    %90 = vector.broadcast %cst_44 : f32 to vector<1x128xf32>
    %91 = arith.mulf %86, %90 : vector<1x128xf32>
    %cst_45 = arith.constant 1.250000e-01 : f32
    %92 = vector.broadcast %cst_45 : f32 to vector<1x128xf32>
    %93 = arith.mulf %89, %92 : vector<1x128xf32>
    %94 = arith.mulf %91, %91 : vector<1x128xf32>
    %95 = arith.subf %93, %94 : vector<1x128xf32>
    %96 = vector.broadcast %91 : vector<1x128xf32> to vector<8x128xf32>
    %97 = arith.subf %84, %96 : vector<8x128xf32>
    %cst_46 = arith.constant 9.99999974E-6 : f32
    %98 = vector.broadcast %cst_46 : f32 to vector<1x128xf32>
    %99 = arith.addf %95, %98 : vector<1x128xf32>
    %100 = math.rsqrt %99 : vector<1x128xf32>
    %101 = vector.broadcast %100 : vector<1x128xf32> to vector<8x128xf32>
    %102 = arith.mulf %97, %101 : vector<8x128xf32>
    %103 = vector.broadcast %7 : vector<1x128xf32> to vector<8x128xf32>
    %104 = arith.mulf %102, %103 : vector<8x128xf32>
    %105 = vector.broadcast %8 : vector<1x128xf32> to vector<8x128xf32>
    %106 = arith.addf %104, %105 : vector<8x128xf32>
    %cst_47 = arith.constant 0.000000e+00 : f32
    %107 = vector.broadcast %cst_47 : f32 to vector<8x128xf32>
    %108 = arith.maximumf %106, %107 : vector<8x128xf32>
    %c0_48 = arith.constant 0 : index
    %c0_49 = arith.constant 0 : index
    %109 = vector.load %arg6[%c0_48, %c0_49] : memref<128x128xf32, #tpu.memory_space<vmem>>, vector<128x128xf32>
    %cst_50 = arith.constant dense<0.000000e+00> : vector<8x128xf32>
    %110 = tpu.matmul %108, %109, %cst_50 {dimension_numbers = #tpu.dot_dimension_numbers<[1], [0], [0], [1], [0, 0, 1, 1], [], []>} : vector<8x128xf32>, vector<128x128xf32>, vector<8x128xf32> -> vector<8x128xf32>
    %111 = vector.broadcast %9 : vector<1x128xf32> to vector<8x128xf32>
    %112 = arith.addf %110, %111 : vector<8x128xf32>
    %c0_51 = arith.constant 0 : index
    %c0_52 = arith.constant 0 : index
    %113 = vector.load %arg9[%c0_51, %c0_52] : memref<8x128xf32, #tpu.memory_space<vmem>>, vector<8x128xf32>
    tpu.vector_store %arg9[%c0_51, %c0_52], %112 {strides = array<i32>} : memref<8x128xf32, #tpu.memory_space<vmem>>, vector<8x128xf32>,
    return
  }
}

</mosaic_0001>

<llo_original>
// kernel: simsiam_forward.1
$region0: #{simsiam_forward.1}
  #allocation0 [shape = 'u32[]', space=smem, size = 0x4, offset = 0x4, fixed_abs, tag = 'smem constant byte address 0x4 - core index']
  #allocation1 [shape = 'u32[72,128]{1,0:T(1,128)}', space=vmem, size = 0x9000, scoped, tag = 'internal scratch']
  %s0 = inlined_call_operand.vmem [shape: f32[8,256], index: 0, kind: input, shape index: {}]
  %s1 = inlined_call_operand.vmem [shape: f32[256,128], index: 1, kind: input, shape index: {}]
  %s2 = inlined_call_operand.vmem [shape: f32[128,128], index: 2, kind: input, shape index: {}]
  %s3 = inlined_call_operand.vmem [shape: f32[128,128], index: 3, kind: input, shape index: {}]
  %s4 = inlined_call_operand.vmem [shape: f32[128,128], index: 4, kind: input, shape index: {}]
  %s5 = inlined_call_operand.vmem [shape: f32[128,128], index: 5, kind: input, shape index: {}]
  %s6 = inlined_call_operand.vmem [shape: f32[128,128], index: 6, kind: input, shape index: {}]
  %s7 = inlined_call_operand.vmem [shape: f32[8,128], index: 7, kind: input, shape index: {}]
  %s8 = inlined_call_operand.hbm [shape: f32[8,128], index: 8, kind: output, shape index: {0}]
  %s9 = inlined_call_operand.hbm [shape: f32[8,128], index: 9, kind: output, shape index: {1}]
  %10 = xla_tuple %s8, %s9
  %s11 = sld [smem:[#allocation0]]
  $region50: #{simsiam_forward.1} parent=0
    _
  %s13 = ssub.s32 1, %s11
  %s14 = scalar_select 0, %s13, %s11
  $region1: #{simsiam_forward.1} parent=0
    #allocation2 [shape = 'u8[4096]{0}', space=vmem, size = 0x1000, scoped, tag = 'output window, operand 0, single buffered']
    #allocation3 [shape = 's32[1]{0}', space=sflag, size = 0x4, scoped, tag = 'scoped memory for simsiam_forward.1']
    #allocation4 [shape = 'u8[4096]{0}', space=vmem, size = 0x1000, scoped, tag = 'output window, operand 1, single buffered']
    #allocation5 [shape = 's32[1]{0}', space=sflag, size = 0x4, scoped, tag = 'scoped memory for simsiam_forward.1']
    %15 = vsyncpa [#allocation3], 0
    %16 = vsyncpa [#allocation5], 0
    // Predicated region
    $region2: #{simsiam_forward.1} parent=1 // pred_check
      _
    $region3: #{simsiam_forward.1} parent=1 // pred_check_branch
      %18 = sbr.rel (0) target = $region5
    $region4: #{simsiam_forward.1} parent=1 // pred_region
      _
    $region5: #{simsiam_forward.1} parent=1 // pred_fallthru
      _
    // Predicated region
    $region6: #{simsiam_forward.1} parent=1 // pred_check
      _
    $region7: #{simsiam_forward.1} parent=1 // pred_check_branch
      %20 = sbr.rel (0) target = $region9
    $region8: #{simsiam_forward.1} parent=1 // pred_region
      _
    $region9: #{simsiam_forward.1} parent=1 // pred_fallthru
      _
    // Predicated region
    $region10: #{simsiam_forward.1} parent=1 // pred_check
      _
    $region11: #{simsiam_forward.1} parent=1 // pred_check_branch
      %22 = sbr.rel (0) target = $region13
    $region12: #{simsiam_forward.1} parent=1 // pred_region
      _
    $region13: #{simsiam_forward.1} parent=1 // pred_fallthru
      _
    // Predicated region
    $region14: #{simsiam_forward.1} parent=1 // pred_check
      _
    $region15: #{simsiam_forward.1} parent=1 // pred_check_branch
      %24 = sbr.rel (0) target = $region17
    $region16: #{simsiam_forward.1} parent=1 // pred_region
      _
    $region17: #{simsiam_forward.1} parent=1 // pred_fallthru
      _
    // Predicated region
    $region18: #{simsiam_forward.1} parent=1 // pred_check
      _
    $region19: #{simsiam_forward.1} parent=1 // pred_check_branch
      %26 = sbr.rel (0) target = $region21
    $region20: #{simsiam_forward.1} parent=1 // pred_region
      _
    $region21: #{simsiam_forward.1} parent=1 // pred_fallthru
      _
    // Predicated region
    $region22: #{simsiam_forward.1} parent=1 // pred_check
      _
    $region23: #{simsiam_forward.1} parent=1 // pred_check_branch
      %28 = sbr.rel (0) target = $region25
    $region24: #{simsiam_forward.1} parent=1 // pred_region
      _
    $region25: #{simsiam_forward.1} parent=1 // pred_fallthru
      _
    // Predicated region
    $region26: #{simsiam_forward.1} parent=1 // pred_check
      _
    $region27: #{simsiam_forward.1} parent=1 // pred_check_branch
      %30 = sbr.rel (0) target = $region29
    $region28: #{simsiam_forward.1} parent=1 // pred_region
      _
    $region29: #{simsiam_forward.1} parent=1 // pred_fallthru
      _
    // Predicated region
    $region30: #{simsiam_forward.1} parent=1 // pred_check
      _
    $region31: #{simsiam_forward.1} parent=1 // pred_check_branch
      %32 = sbr.rel (0) target = $region33
    $region32: #{simsiam_forward.1} parent=1 // pred_region
      _
    $region33: #{simsiam_forward.1} parent=1 // pred_fallthru
      _
    %v33 = vld [vmem:[%s0] sm:$0xff]
    %v34 = vld [vmem:[%s0 + $0x8] sm:$0xff]
    %v35 = vld [vmem:[%s1] sm:$0xff]
    %v36 = vld [vmem:[%s1 + $0x8] sm:$0xff]
    %v37 = vld [vmem:[%s1 + $0x10] sm:$0xff]
    %v38 = vld [vmem:[%s1 + $0x18] sm:$0xff]
    %v39 = vld [vmem:[%s1 + $0x20] sm:$0xff]
    %v40 = vld [vmem:[%s1 + $0x28] sm:$0xff]
    %v41 = vld [vmem:[%s1 + $0x30] sm:$0xff]
    %v42 = vld [vmem:[%s1 + $0x38] sm:$0xff]
    %v43 = vld [vmem:[%s1 + $0x40] sm:$0xff]
    %v44 = vld [vmem:[%s1 + $0x48] sm:$0xff]
    %v45 = vld [vmem:[%s1 + $0x50] sm:$0xff]
    %v46 = vld [vmem:[%s1 + $0x58] sm:$0xff]
    %v47 = vld [vmem:[%s1 + $0x60] sm:$0xff]
    %v48 = vld [vmem:[%s1 + $0x68] sm:$0xff]
    %v49 = vld [vmem:[%s1 + $0x70] sm:$0xff]
    %v50 = vld [vmem:[%s1 + $0x78] sm:$0xff]
    %v51 = vld [vmem:[%s1 + $0x80] sm:$0xff]
    %v52 = vld [vmem:[%s1 + $0x88] sm:$0xff]
    %v53 = vld [vmem:[%s1 + $0x90] sm:$0xff]
    %v54 = vld [vmem:[%s1 + $0x98] sm:$0xff]
    %v55 = vld [vmem:[%s1 + $0xa0] sm:$0xff]
    %v56 = vld [vmem:[%s1 + $0xa8] sm:$0xff]
    %v57 = vld [vmem:[%s1 + $0xb0] sm:$0xff]
    %v58 = vld [vmem:[%s1 + $0xb8] sm:$0xff]
    %v59 = vld [vmem:[%s1 + $0xc0] sm:$0xff]
    %v60 = vld [vmem:[%s1 + $0xc8] sm:$0xff]
    %v61 = vld [vmem:[%s1 + $0xd0] sm:$0xff]
    %v62 = vld [vmem:[%s1 + $0xd8] sm:$0xff]
    %v63 = vld [vmem:[%s1 + $0xe0] sm:$0xff]
    %v64 = vld [vmem:[%s1 + $0xe8] sm:$0xff]
    %v65 = vld [vmem:[%s1 + $0xf0] sm:$0xff]
    %v66 = vld [vmem:[%s1 + $0xf8] sm:$0xff]
    %67 = vmatpush.msra.mxu0 %v50
    %68 = vmatpush.msra.mxu0 %v49
    %69 = vmatpush.msra.mxu0 %v48
    %70 = vmatpush.msra.mxu0 %v47
    %71 = vmatpush.msra.mxu0 %v46
    %72 = vmatpush.msra.mxu0 %v45
    %73 = vmatpush.msra.mxu0 %v44
    %74 = vmatpush.msra.mxu0 %v43
    %75 = vmatpush.msra.mxu0 %v42
    %76 = vmatpush.msra.mxu0 %v41
    %77 = vmatpush.msra.mxu0 %v40
    %78 = vmatpush.msra.mxu0 %v39
    %79 = vmatpush.msra.mxu0 %v38
    %80 = vmatpush.msra.mxu0 %v37
    %81 = vmatpush.msra.mxu0 %v36
    %82 = vmatpush.msra.mxu0 %v35
    %83 = vmatmul.f32.gmra.mxu0 %v33
    %v84 = vpop.f32.mrf.mxu0
    %v85 = vadd.f32 0.0, %v84
    %86 = vdwg.mxu0
    %87 = vmatpush.msra.mxu0 %v66
    %88 = vmatpush.msra.mxu0 %v65
    %89 = vmatpush.msra.mxu0 %v64
    %90 = vmatpush.msra.mxu0 %v63
    %91 = vmatpush.msra.mxu0 %v62
    %92 = vmatpush.msra.mxu0 %v61
    %93 = vmatpush.msra.mxu0 %v60
    %94 = vmatpush.msra.mxu0 %v59
    %95 = vmatpush.msra.mxu0 %v58
    %96 = vmatpush.msra.mxu0 %v57
    %97 = vmatpush.msra.mxu0 %v56
    %98 = vmatpush.msra.mxu0 %v55
    %99 = vmatpush.msra.mxu0 %v54
    %100 = vmatpush.msra.mxu0 %v53
    %101 = vmatpush.msra.mxu0 %v52
    %102 = vmatpush.msra.mxu0 %v51
    %103 = vmatmul.f32.gmra.mxu0 %v34
    %v104 = vpop.f32.mrf.mxu0
    %v105 = vadd.f32 %v85, %v104
    %106 = vdwg.mxu0
    %v107 = vld [vmem:[%s7] sm:$0x1]
    %v108 = vld [vmem:[%s7 + $0x1] sm:$0x1]
    %v109 = vld [vmem:[%s7 + $0x2] sm:$0x1]
    %v110 = vld [vmem:[%s7 + $0x3] sm:$0x1]
    %v111 = vld [vmem:[%s7 + $0x4] sm:$0x1]
    %v112 = vld [vmem:[%s7 + $0x5] sm:$0x1]
    %v113 = vld [vmem:[%s7 + $0x6] sm:$0x1]
    %v114 = vld [vmem:[%s2] sm:$0xff]
    %v115 = vld [vmem:[%s2 + $0x8] sm:$0xff]
    %v116 = vld [vmem:[%s2 + $0x10] sm:$0xff]
    %v117 = vld [vmem:[%s2 + $0x18] sm:$0xff]
    %v118 = vld [vmem:[%s2 + $0x20] sm:$0xff]
    %v119 = vld [vmem:[%s2 + $0x28] sm:$0xff]
    %v120 = vld [vmem:[%s2 + $0x30] sm:$0xff]
    %v121 = vld [vmem:[%s2 + $0x38] sm:$0xff]
    %v122 = vld [vmem:[%s2 + $0x40] sm:$0xff]
    %v123 = vld [vmem:[%s2 + $0x48] sm:$0xff]
    %v124 = vld [vmem:[%s2 + $0x50] sm:$0xff]
    %v125 = vld [vmem:[%s2 + $0x58] sm:$0xff]
    %v126 = vld [vmem:[%s2 + $0x60] sm:$0xff]
    %v127 = vld [vmem:[%s2 + $0x68] sm:$0xff]
    %v128 = vld [vmem:[%s2 + $0x70] sm:$0xff]
    %v129 = vld [vmem:[%s2 + $0x78] sm:$0xff]
    %130 = vmatpush.msra.mxu0 %v129
    %131 = vmatpush.msra.mxu0 %v128
    %132 = vmatpush.msra.mxu0 %v127
    %133 = vmatpush.msra.mxu0 %v126
    %134 = vmatpush.msra.mxu0 %v125
    %135 = vmatpush.msra.mxu0 %v124
    %136 = vmatpush.msra.mxu0 %v123
    %137 = vmatpush.msra.mxu0 %v122
    %138 = vmatpush.msra.mxu0 %v121
    %139 = vmatpush.msra.mxu0 %v120
    %140 = vmatpush.msra.mxu0 %v119
    %141 = vmatpush.msra.mxu0 %v118
    %142 = vmatpush.msra.mxu0 %v117
    %143 = vmatpush.msra.mxu0 %v116
    %144 = vmatpush.msra.mxu0 %v115
    %145 = vmatpush.msra.mxu0 %v114
    %146 = vmatmul.f32.gmra.mxu0 %v105
    %v147 = vpop.f32.mrf.mxu0
    %v148 = vadd.f32 0.0, %v147
    %149 = vdwg.mxu0
    %v150 = vrot.slane %v148, 4
    %v151 = vadd.f32 %v148, %v150
    %v152 = vrot.slane %v151, 2
    %v153 = vadd.f32 %v151, %v152
    %v154 = vrot.slane %v153, 1
    %v155 = vadd.f32 %v153, %v154
    %v156 = vmul.f32 %v148, %v148
    %v157 = vrot.slane %v156, 4
    %v158 = vadd.f32 %v156, %v157
    %v159 = vrot.slane %v158, 2
    %v160 = vadd.f32 %v158, %v159
    %v161 = vrot.slane %v160, 1
    %v162 = vadd.f32 %v160, %v161
    %v163 = vmul.f32 %v155, 0.125
    %v164 = vmul.f32 %v162, 0.125
    %v165 = vmul.f32 %v163, %v163
    %v166 = vsub.f32 %v164, %v165
    %v167 = vsub.f32 %v148, %v163
    %v168 = vadd.f32 %v166, 1e-05
    %v169 = vrsqrt.pop %v168
    %v170 = vmul.f32 %v169, %v168
    %v171 = vmul.f32 %v170, %v169
    %v172 = vmul.f32 0.5, %v171
    %v173 = vsub.f32 1.5, %v172
    %v174 = vmul.f32 %v169, %v173
    %vm175 = vweird.f32 %v168
    %vm176 = vweird.f32 %v169
    %vm177 = vmor %vm175, %vm176
    %v178 = vsel %vm177, %v169, %v174
    %v179 = vmul.f32 %v167, %v178
    %v180 = vperm.slane %v107, 0
    %v181 = vmul.f32 %v179, %v180
    %v182 = vperm.slane %v108, 0
    %v183 = vadd.f32 %v181, %v182
    %v184 = vmax.f32 %v183, 0.0
    %v185 = vld [vmem:[%s3] sm:$0xff]
    %v186 = vld [vmem:[%s3 + $0x8] sm:$0xff]
    %v187 = vld [vmem:[%s3 + $0x10] sm:$0xff]
    %v188 = vld [vmem:[%s3 + $0x18] sm:$0xff]
    %v189 = vld [vmem:[%s3 + $0x20] sm:$0xff]
    %v190 = vld [vmem:[%s3 + $0x28] sm:$0xff]
    %v191 = vld [vmem:[%s3 + $0x30] sm:$0xff]
    %v192 = vld [vmem:[%s3 + $0x38] sm:$0xff]
    %v193 = vld [vmem:[%s3 + $0x40] sm:$0xff]
    %v194 = vld [vmem:[%s3 + $0x48] sm:$0xff]
    %v195 = vld [vmem:[%s3 + $0x50] sm:$0xff]
    %v196 = vld [vmem:[%s3 + $0x58] sm:$0xff]
    %v197 = vld [vmem:[%s3 + $0x60] sm:$0xff]
    %v198 = vld [vmem:[%s3 + $0x68] sm:$0xff]
    %v199 = vld [vmem:[%s3 + $0x70] sm:$0xff]
    %v200 = vld [vmem:[%s3 + $0x78] sm:$0xff]
    %201 = vmatpush.msra.mxu0 %v200
    %202 = vmatpush.msra.mxu0 %v199
    %203 = vmatpush.msra.mxu0 %v198
    %204 = vmatpush.msra.mxu0 %v197
    %205 = vmatpush.msra.mxu0 %v196
    %206 = vmatpush.msra.mxu0 %v195
    %207 = vmatpush.msra.mxu0 %v194
    %208 = vmatpush.msra.mxu0 %v193
    %209 = vmatpush.msra.mxu0 %v192
    %210 = vmatpush.msra.mxu0 %v191
    %211 = vmatpush.msra.mxu0 %v190
    %212 = vmatpush.msra.mxu0 %v189
    %213 = vmatpush.msra.mxu0 %v188
    %214 = vmatpush.msra.mxu0 %v187
    %215 = vmatpush.msra.mxu0 %v186
    %216 = vmatpush.msra.mxu0 %v185
    %217 = vmatmul.f32.gmra.mxu0 %v184
    %v218 = vpop.f32.mrf.mxu0
    %v219 = vadd.f32 0.0, %v218
    %220 = vdwg.mxu0
    %v221 = vrot.slane %v219, 4
    %v222 = vadd.f32 %v219, %v221
    %v223 = vrot.slane %v222, 2
    %v224 = vadd.f32 %v222, %v223
    %v225 = vrot.slane %v224, 1
    %v226 = vadd.f32 %v224, %v225
    %v227 = vmul.f32 %v219, %v219
    %v228 = vrot.slane %v227, 4
    %v229 = vadd.f32 %v227, %v228
    %v230 = vrot.slane %v229, 2
    %v231 = vadd.f32 %v229, %v230
    %v232 = vrot.slane %v231, 1
    %v233 = vadd.f32 %v231, %v232
    %v234 = vmul.f32 %v226, 0.125
    %v235 = vmul.f32 %v233, 0.125
    %v236 = vmul.f32 %v234, %v234
    %v237 = vsub.f32 %v235, %v236
    %v238 = vsub.f32 %v219, %v234
    %v239 = vadd.f32 %v237, 1e-05
    %v240 = vrsqrt.pop %v239
    %v241 = vmul.f32 %v240, %v239
    %v242 = vmul.f32 %v241, %v240
    %v243 = vmul.f32 0.5, %v242
    %v244 = vsub.f32 1.5, %v243
    %v245 = vmul.f32 %v240, %v244
    %vm246 = vweird.f32 %v239
    %vm247 = vweird.f32 %v240
    %vm248 = vmor %vm246, %vm247
    %v249 = vsel %vm248, %v240, %v245
    %v250 = vmul.f32 %v238, %v249
    %v251 = vperm.slane %v109, 0
    %v252 = vmul.f32 %v250, %v251
    %v253 = vperm.slane %v110, 0
    %v254 = vadd.f32 %v252, %v253
    %v255 = vmax.f32 %v254, 0.0
    %v256 = vld [vmem:[%s4] sm:$0xff]
    %v257 = vld [vmem:[%s4 + $0x8] sm:$0xff]
    %v258 = vld [vmem:[%s4 + $0x10] sm:$0xff]
    %v259 = vld [vmem:[%s4 + $0x18] sm:$0xff]
    %v260 = vld [vmem:[%s4 + $0x20] sm:$0xff]
    %v261 = vld [vmem:[%s4 + $0x28] sm:$0xff]
    %v262 = vld [vmem:[%s4 + $0x30] sm:$0xff]
    %v263 = vld [vmem:[%s4 + $0x38] sm:$0xff]
    %v264 = vld [vmem:[%s4 + $0x40] sm:$0xff]
    %v265 = vld [vmem:[%s4 + $0x48] sm:$0xff]
    %v266 = vld [vmem:[%s4 + $0x50] sm:$0xff]
    %v267 = vld [vmem:[%s4 + $0x58] sm:$0xff]
    %v268 = vld [vmem:[%s4 + $0x60] sm:$0xff]
    %v269 = vld [vmem:[%s4 + $0x68] sm:$0xff]
    %v270 = vld [vmem:[%s4 + $0x70] sm:$0xff]
    %v271 = vld [vmem:[%s4 + $0x78] sm:$0xff]
    %272 = vmatpush.msra.mxu0 %v271
    %273 = vmatpush.msra.mxu0 %v270
    %274 = vmatpush.msra.mxu0 %v269
    %275 = vmatpush.msra.mxu0 %v268
    %276 = vmatpush.msra.mxu0 %v267
    %277 = vmatpush.msra.mxu0 %v266
    %278 = vmatpush.msra.mxu0 %v265
    %279 = vmatpush.msra.mxu0 %v264
    %280 = vmatpush.msra.mxu0 %v263
    %281 = vmatpush.msra.mxu0 %v262
    %282 = vmatpush.msra.mxu0 %v261
    %283 = vmatpush.msra.mxu0 %v260
    %284 = vmatpush.msra.mxu0 %v259
    %285 = vmatpush.msra.mxu0 %v258
    %286 = vmatpush.msra.mxu0 %v257
    %287 = vmatpush.msra.mxu0 %v256
    %288 = vmatmul.f32.gmra.mxu0 %v255
    %v289 = vpop.f32.mrf.mxu0
    %v290 = vadd.f32 0.0, %v289
    %291 = vdwg.mxu0
    %v292 = vrot.slane %v290, 4
    %v293 = vadd.f32 %v290, %v292
    %v294 = vrot.slane %v293, 2
    %v295 = vadd.f32 %v293, %v294
    %v296 = vrot.slane %v295, 1
    %v297 = vadd.f32 %v295, %v296
    %v298 = vmul.f32 %v290, %v290
    %v299 = vrot.slane %v298, 4
    %v300 = vadd.f32 %v298, %v299
    %v301 = vrot.slane %v300, 2
    %v302 = vadd.f32 %v300, %v301
    %v303 = vrot.slane %v302, 1
    %v304 = vadd.f32 %v302, %v303
    %v305 = vmul.f32 %v297, 0.125
    %v306 = vmul.f32 %v304, 0.125
    %v307 = vmul.f32 %v305, %v305
    %v308 = vsub.f32 %v306, %v307
    %v309 = vsub.f32 %v290, %v305
    %v310 = vadd.f32 %v308, 1e-05
    %v311 = vrsqrt.pop %v310
    %v312 = vmul.f32 %v311, %v310
    %v313 = vmul.f32 %v312, %v311
    %v314 = vmul.f32 0.5, %v313
    %v315 = vsub.f32 1.5, %v314
    %v316 = vmul.f32 %v311, %v315
    %vm317 = vweird.f32 %v310
    %vm318 = vweird.f32 %v311
    %vm319 = vmor %vm317, %vm318
    %v320 = vsel %vm319, %v311, %v316
    %v321 = vmul.f32 %v309, %v320
    %322 = vst [vmem:[#allocation2] sm:$0xff] %v321
    %v323 = vld [vmem:[%s5] sm:$0xff]
    %v324 = vld [vmem:[%s5 + $0x8] sm:$0xff]
    %v325 = vld [vmem:[%s5 + $0x10] sm:$0xff]
    %v326 = vld [vmem:[%s5 + $0x18] sm:$0xff]
    %v327 = vld [vmem:[%s5 + $0x20] sm:$0xff]
    %v328 = vld [vmem:[%s5 + $0x28] sm:$0xff]
    %v329 = vld [vmem:[%s5 + $0x30] sm:$0xff]
    %v330 = vld [vmem:[%s5 + $0x38] sm:$0xff]
    %v331 = vld [vmem:[%s5 + $0x40] sm:$0xff]
    %v332 = vld [vmem:[%s5 + $0x48] sm:$0xff]
    %v333 = vld [vmem:[%s5 + $0x50] sm:$0xff]
    %v334 = vld [vmem:[%s5 + $0x58] sm:$0xff]
    %v335 = vld [vmem:[%s5 + $0x60] sm:$0xff]
    %v336 = vld [vmem:[%s5 + $0x68] sm:$0xff]
    %v337 = vld [vmem:[%s5 + $0x70] sm:$0xff]
    %v338 = vld [vmem:[%s5 + $0x78] sm:$0xff]
    %339 = vmatpush.msra.mxu0 %v338
    %340 = vmatpush.msra.mxu0 %v337
    %341 = vmatpush.msra.mxu0 %v336
    %342 = vmatpush.msra.mxu0 %v335
    %343 = vmatpush.msra.mxu0 %v334
    %344 = vmatpush.msra.mxu0 %v333
    %345 = vmatpush.msra.mxu0 %v332
    %346 = vmatpush.msra.mxu0 %v331
    %347 = vmatpush.msra.mxu0 %v330
    %348 = vmatpush.msra.mxu0 %v329
    %349 = vmatpush.msra.mxu0 %v328
    %350 = vmatpush.msra.mxu0 %v327
    %351 = vmatpush.msra.mxu0 %v326
    %352 = vmatpush.msra.mxu0 %v325
    %353 = vmatpush.msra.mxu0 %v324
    %354 = vmatpush.msra.mxu0 %v323
    %355 = vmatmul.f32.gmra.mxu0 %v105
    %v356 = vpop.f32.mrf.mxu0
    %v357 = vadd.f32 0.0, %v356
    %358 = vdwg.mxu0
    %v359 = vrot.slane %v357, 4
    %v360 = vadd.f32 %v357, %v359
    %v361 = vrot.slane %v360, 2
    %v362 = vadd.f32 %v360, %v361
    %v363 = vrot.slane %v362, 1
    %v364 = vadd.f32 %v362, %v363
    %v365 = vmul.f32 %v357, %v357
    %v366 = vrot.slane %v365, 4
    %v367 = vadd.f32 %v365, %v366
    %v368 = vrot.slane %v367, 2
    %v369 = vadd.f32 %v367, %v368
    %v370 = vrot.slane %v369, 1
    %v371 = vadd.f32 %v369, %v370
    %v372 = vmul.f32 %v364, 0.125
    %v373 = vmul.f32 %v371, 0.125
    %v374 = vmul.f32 %v372, %v372
    %v375 = vsub.f32 %v373, %v374
    %v376 = vsub.f32 %v357, %v372
    %v377 = vadd.f32 %v375, 1e-05
    %v378 = vrsqrt.pop %v377
    %v379 = vmul.f32 %v378, %v377
    %v380 = vmul.f32 %v379, %v378
    %v381 = vmul.f32 0.5, %v380
    %v382 = vsub.f32 1.5, %v381
    %v383 = vmul.f32 %v378, %v382
    %vm384 = vweird.f32 %v377
    %vm385 = vweird.f32 %v378
    %vm386 = vmor %vm384, %vm385
    %v387 = vsel %vm386, %v378, %v383
    %v388 = vmul.f32 %v376, %v387
    %v389 = vperm.slane %v111, 0
    %v390 = vmul.f32 %v388, %v389
    %v391 = vperm.slane %v112, 0
    %v392 = vadd.f32 %v390, %v391
    %v393 = vmax.f32 %v392, 0.0
    %v394 = vld [vmem:[%s6] sm:$0xff]
    %v395 = vld [vmem:[%s6 + $0x8] sm:$0xff]
    %v396 = vld [vmem:[%s6 + $0x10] sm:$0xff]
    %v397 = vld [vmem:[%s6 + $0x18] sm:$0xff]
    %v398 = vld [vmem:[%s6 + $0x20] sm:$0xff]
    %v399 = vld [vmem:[%s6 + $0x28] sm:$0xff]
    %v400 = vld [vmem:[%s6 + $0x30] sm:$0xff]
    %v401 = vld [vmem:[%s6 + $0x38] sm:$0xff]
    %v402 = vld [vmem:[%s6 + $0x40] sm:$0xff]
    %v403 = vld [vmem:[%s6 + $0x48] sm:$0xff]
    %v404 = vld [vmem:[%s6 + $0x50] sm:$0xff]
    %v405 = vld [vmem:[%s6 + $0x58] sm:$0xff]
    %v406 = vld [vmem:[%s6 + $0x60] sm:$0xff]
    %v407 = vld [vmem:[%s6 + $0x68] sm:$0xff]
    %v408 = vld [vmem:[%s6 + $0x70] sm:$0xff]
    %v409 = vld [vmem:[%s6 + $0x78] sm:$0xff]
    %v410 = vperm.slane %v113, 0
    %411 = vmatpush.msra.mxu0 %v409
    %412 = vmatpush.msra.mxu0 %v408
    %413 = vmatpush.msra.mxu0 %v407
    %414 = vmatpush.msra.mxu0 %v406
    %415 = vmatpush.msra.mxu0 %v405
    %416 = vmatpush.msra.mxu0 %v404
    %417 = vmatpush.msra.mxu0 %v403
    %418 = vmatpush.msra.mxu0 %v402
    %419 = vmatpush.msra.mxu0 %v401
    %420 = vmatpush.msra.mxu0 %v400
    %421 = vmatpush.msra.mxu0 %v399
    %422 = vmatpush.msra.mxu0 %v398
    %423 = vmatpush.msra.mxu0 %v397
    %424 = vmatpush.msra.mxu0 %v396
    %425 = vmatpush.msra.mxu0 %v395
    %426 = vmatpush.msra.mxu0 %v394
    %427 = vmatmul.f32.gmra.mxu0 %v393
    %v428 = vpop.f32.mrf.mxu0
    %v429 = vadd.f32 %v410, %v428
    %430 = vdwg.mxu0
    %431 = vst [vmem:[#allocation4] sm:$0xff] %v429
    // Predicated region
    $region34: #{simsiam_forward.1} parent=1 // pred_check
      _
    $region35: #{simsiam_forward.1} parent=1 // pred_check_branch
      %433 = sbr.rel (0) target = $region37
    $region36: #{simsiam_forward.1} parent=1 // pred_region
      %435 = vsyncadd [#allocation3], 0
      %s437 = sshll.u32 [#allocation2], 4
      %s438 = int_to_ptr.vmem [resolvable:$true] %s437
      %s439 = sshll.u32 %s8, 4
      %s440 = int_to_ptr.hbm [resolvable:$true] %s439
      %442 = dma.vmem_to_hbm [thread:$0]  %s438, 128, %s440, [#allocation3]
    $region37: #{simsiam_forward.1} parent=1 // pred_fallthru
      _
    // Predicated region
    $region38: #{simsiam_forward.1} parent=1 // pred_check
      _
    $region39: #{simsiam_forward.1} parent=1 // pred_check_branch
      %444 = sbr.rel (0) target = $region41
    $region40: #{simsiam_forward.1} parent=1 // pred_region
      %446 = vsyncadd [#allocation5], 0
      %s448 = sshll.u32 [#allocation4], 4
      %s449 = int_to_ptr.vmem [resolvable:$true] %s448
      %s450 = sshll.u32 %s9, 4
      %s451 = int_to_ptr.hbm [resolvable:$true] %s450
      %453 = dma.vmem_to_hbm [thread:$0]  %s449, 128, %s451, [#allocation5]
    $region41: #{simsiam_forward.1} parent=1 // pred_fallthru
      _
    // Predicated region
    $region42: #{simsiam_forward.1} parent=1 // pred_check
      _
    $region43: #{simsiam_forward.1} parent=1 // pred_check_branch
      %455 = sbr.rel (0) target = $region45
    $region44: #{simsiam_forward.1} parent=1 // pred_region
      %457 = dma.done [#allocation3], 128
    $region45: #{simsiam_forward.1} parent=1 // pred_fallthru
      _
    // Predicated region
    $region46: #{simsiam_forward.1} parent=1 // pred_check
      _
    $region47: #{simsiam_forward.1} parent=1 // pred_check_branch
      %459 = sbr.rel (0) target = $region49
    $region48: #{simsiam_forward.1} parent=1 // pred_region
      %461 = dma.done [#allocation5], 128
    $region49: #{simsiam_forward.1} parent=1 // pred_fallthru
      _
    %462 = vsyncpa [#allocation3], 1
    %463 = vsyncpa [#allocation5], 1

</llo_original>
